<compile_context>
chip_gen: v6e
topology: v6e:2x2x1
jax: 0.10.0
libtpu: 0.0.40
codegen_flags: <defaults>
</compile_context>

<pallas_src>
import jax
import jax.numpy as jnp
from jax.experimental import pallas as pl
from jax.experimental.pallas import tpu as pltpu


def _round_up(x, m):
    return ((x + m - 1) // m) * m


def _cdiv(a, b):
    return -(-a // b)


def _int_pow(x, n):
    """x ** n for a static integer n >= 1 via square-and-multiply (VALU only)."""
    acc = None
    base = x
    while n:
        if n & 1:
            acc = base if acc is None else acc * base
        n >>= 1
        if n:
            base = base * base
    return acc


def _make_gem_kernel(eps, hw, bnc, bhw, p_static=None):
    """Build the GeM kernel body.

    eps / hw / bnc / bhw are static.  If `p_static` is a small integer the
    per-element power is square-and-multiply (no transcendentals) and the
    SMEM `p` operand is omitted; otherwise p is read from SMEM at run time.
    """
    inv_hw = 1.0 / float(hw)
    n_lane_blocks = bhw // 128
    needs_mask = (hw % bhw) != 0

    def kernel(*refs):
        if p_static is None:
            p_ref, x_ref, o_ref, acc_ref = refs
            p = p_ref[0]
            inv_p = 1.0 / p
        else:
            x_ref, o_ref, acc_ref = refs
            inv_p = jnp.float32(1.0 / float(p_static))

        k = pl.program_id(1)

        @pl.when(k == 0)
        def _():
            acc_ref[...] = jnp.zeros_like(acc_ref)

        x = x_ref[...].astype(jnp.float32)      # f32 math (mandatory on v5e)
        x = jnp.maximum(x, eps)                 # clamp(min=eps)

        if p_static is not None:
            xp = _int_pow(x, int(p_static))     # VALU-only power
        else:
            xp = jnp.exp(p * jnp.log(x))        # x ** p  (x >= eps > 0)

        if needs_mask:
            # ragged last lane tile: zero out lanes past the true H*W extent
            lane = jax.lax.broadcasted_iota(jnp.int32, (bnc, bhw), 1)
            xp = jnp.where(lane < (hw - k * bhw), xp, 0.0)

        # Lane-dense accumulation: reduce (bnc, bhw) -> (bnc, 128) with
        # vreg-aligned 128-lane slice adds (pure VALU, no per-step XLU).
        partial = xp[:, 0:128]
        for j in range(1, n_lane_blocks):
            partial = partial + xp[:, j * 128:(j + 1) * 128]
        acc_ref[...] += partial

        @pl.when(k == pl.num_programs(1) - 1)
        def _():
            # single cross-lane reduce per row tile
            s = jnp.sum(acc_ref[...], axis=-1, keepdims=True)
            m = s * inv_hw                      # mean over the true H*W
            o_ref[...] = jnp.exp(jnp.log(m) * inv_p).astype(o_ref.dtype)

    return kernel


def gem_pool(x, p, eps=1e-6):
    """Generalized mean pooling. x: (N, C, H, W), p: (1,) float32.

    Returns (N, C, 1, 1), matching the F.avg_pool2d-based PyTorch GeM.
    """
    N, C, H, W = x.shape
    nc, hw = N * C, H * W
    x2d = x.reshape(nc, hw)                     # zero-copy collapse of NCHW

    itemsize = x.dtype.itemsize
    sub_m = {4: 8, 2: 16, 1: 32}.get(itemsize, 8)   # min sublane tile per dtype

    # ---- generation-aware tile sizing (~8 MiB per input buffer) ----
    try:
        vmem_cap = int(pltpu.get_tpu_info().vmem_capacity_bytes)
    except Exception:
        vmem_cap = 64 * 1024 * 1024             # conservative (v7x per-core)
    tile_budget = min(8 * 1024 * 1024, vmem_cap // 8)
    vmem_limit = int(min((vmem_cap * 5) // 8, 64 * 1024 * 1024))

    MAX_BHW = 4096                              # lane tile cap (mult. of 128)
    nc_r = _round_up(nc, sub_m)
    hw_r = _round_up(hw, 128)

    bhw = min(hw_r, MAX_BHW)
    bnc = tile_budget // (bhw * itemsize)       # fill the budget with rows
    bnc = max(sub_m, (bnc // sub_m) * sub_m)
    bnc = min(bnc, nc_r)

    # megacore (v7x): make sure the parallel row axis has >= 2 tiles
    if _cdiv(nc, bnc) < 2 and nc > sub_m:
        bnc = _round_up(_cdiv(nc, 2), sub_m)

    grid = (_cdiv(nc, bnc), _cdiv(hw, bhw))

    # ---- integer-p fast path (only when p is a concrete scalar) ----
    p_arr = jnp.asarray(p, dtype=jnp.float32).reshape(-1)
    p_static = None
    try:
        p_val = float(p_arr[0])                 # raises if p is a tracer
        if abs(p_val - round(p_val)) < 1e-6 and 1 <= round(p_val) <= 8:
            p_static = int(round(p_val))
    except Exception:
        p_static = None

    kernel = _make_gem_kernel(eps, hw, bnc, bhw, p_static)

    x_spec = pl.BlockSpec((bnc, bhw), lambda i, k: (i, k))
    out_spec = pl.BlockSpec((bnc, 1), lambda i, k: (i, 0))   # resident over k

    if p_static is None:
        in_specs = [pl.BlockSpec(memory_space=pltpu.MemorySpace.SMEM), x_spec]
        operands = (p_arr, x2d)
    else:
        in_specs = [x_spec]
        operands = (x2d,)

    n_elem = nc * hw
    out2d = pl.pallas_call(
        kernel,
        out_shape=jax.ShapeDtypeStruct((nc, 1), x.dtype),
        grid=grid,
        in_specs=in_specs,
        out_specs=out_spec,
        scratch_shapes=[pltpu.VMEM((bnc, 128), jnp.float32)],
        compiler_params=pltpu.CompilerParams(
            dimension_semantics=("parallel", "arbitrary"),
            vmem_limit_bytes=vmem_limit,
        ),
        cost_estimate=pl.CostEstimate(
            flops=5 * n_elem,
            transcendentals=(0 if p_static is not None else 2 * n_elem) + 2 * nc,
            bytes_accessed=n_elem * itemsize + nc * itemsize,
        ),
    )(*operands)

    return out2d.reshape(N, C, 1, 1)


class GeM:
    """JAX/Pallas port of the PyTorch GeM module."""

    def __init__(self, p=3.0, eps=1e-6):
        # nn.Parameter(torch.ones(1) * p) -> deterministic init in-script
        self.p = jnp.ones((1,), dtype=jnp.float32) * p
        self.eps = eps

    def __call__(self, x):
        return gem_pool(x, self.p, self.eps)


def _reference(x, p, eps):
    # Pure-JAX reference matching the PyTorch forward.
    xc = jnp.maximum(x, eps) ** p[0]
    return jnp.mean(xc, axis=(-2, -1), keepdims=True) ** (1.0 / p[0])


if __name__ == "__main__":
    key = jax.random.PRNGKey(0)
    N, C, H, W = 2, 4, 16, 16
    x = jax.random.uniform(key, (N, C, H, W), dtype=jnp.float32,
                           minval=-0.5, maxval=2.0)

    # Integer-p fast path (inference default p=3)
    gem3 = GeM(p=3.0, eps=1e-6)
    out3 = jax.block_until_ready(gem3(x))
    ref3 = _reference(x, gem3.p, gem3.eps)
    assert out3.shape == (N, C, 1, 1), out3.shape
    assert jnp.allclose(out3, ref3, rtol=1e-4, atol=1e-5), (out3, ref3)

    # General (learned, non-integer p) path: p read from SMEM in-kernel
    gem_f = GeM(p=2.8, eps=1e-6)
    out_f = jax.block_until_ready(gem_f(x))
    ref_f = _reference(x, gem_f.p, gem_f.eps)
    assert out_f.shape == (N, C, 1, 1), out_f.shape
    assert jnp.allclose(out_f, ref_f, rtol=1e-4, atol=1e-5), (out_f, ref_f)

    print("KERNEL_OK")
</pallas_src>

<mosaic_0001>
module attributes {stable_mosaic.version = 11 : i64} {
  func.func @kernel(%arg0: i32, %arg1: i32, %arg2: memref<8x256xf32, #tpu.memory_space<vmem>>, %arg3: memref<8x1xf32, #tpu.memory_space<vmem>>, %arg4: memref<8x128xf32, #tpu.memory_space<vmem>>) attributes {dimension_semantics = [#tpu.dimension_semantics<parallel>, #tpu.dimension_semantics<arbitrary>], iteration_bounds = array<i64: 1, 1>, scalar_prefetch = 0 : i64, scratch_operands = 1 : i64, tpu.core_type = #tpu.core_type<tc>, window_params = [{transform_indices = @transform_0, window_bounds = array<i64: 8, 256>}, {transform_indices = @transform_1, window_bounds = array<i64: 8, 1>}]} {
    %c0_i32 = arith.constant 0 : i32
    %0 = arith.cmpi eq, %arg1, %c0_i32 : i32
    %1 = arith.extui %0 : i1 to i32
    %c0_i32_0 = arith.constant 0 : i32
    %2 = arith.cmpi ne, %1, %c0_i32_0 : i32
    scf.if %2 {
      %cst_9 = arith.constant 0.000000e+00 : f32
      %17 = vector.broadcast %cst_9 : f32 to vector<8x128xf32>
      %c0_10 = arith.constant 0 : index
      %c0_11 = arith.constant 0 : index
      %18 = vector.load %arg4[%c0_10, %c0_11] : memref<8x128xf32, #tpu.memory_space<vmem>>, vector<8x128xf32>
      tpu.vector_store %arg4[%c0_10, %c0_11], %17 {strides = array<i32>} : memref<8x128xf32, #tpu.memory_space<vmem>>, vector<8x128xf32>,
    } else {
    }
    %c0 = arith.constant 0 : index
    %c0_1 = arith.constant 0 : index
    %3 = vector.load %arg2[%c0, %c0_1] : memref<8x256xf32, #tpu.memory_space<vmem>>, vector<8x256xf32>
    %cst = arith.constant 9.99999997E-7 : f32
    %4 = vector.broadcast %cst : f32 to vector<8x256xf32>
    %5 = arith.maximumf %3, %4 : vector<8x256xf32>
    %6 = arith.mulf %5, %5 : vector<8x256xf32>
    %7 = arith.mulf %5, %6 : vector<8x256xf32>
    %8 = vector.extract_strided_slice %7 {offsets = [0, 0], sizes = [8, 128], strides = [1, 1]} : vector<8x256xf32> to vector<8x128xf32>
    %9 = vector.extract_strided_slice %7 {offsets = [0, 128], sizes = [8, 128], strides = [1, 1]} : vector<8x256xf32> to vector<8x128xf32>
    %10 = arith.addf %8, %9 : vector<8x128xf32>
    %c0_2 = arith.constant 0 : index
    %c0_3 = arith.constant 0 : index
    %11 = vector.load %arg4[%c0_2, %c0_3] : memref<8x128xf32, #tpu.memory_space<vmem>>, vector<8x128xf32>
    %12 = arith.addf %11, %10 : vector<8x128xf32>
    %c0_4 = arith.constant 0 : index
    %c0_5 = arith.constant 0 : index
    %13 = vector.load %arg4[%c0_4, %c0_5] : memref<8x128xf32, #tpu.memory_space<vmem>>, vector<8x128xf32>
    tpu.vector_store %arg4[%c0_4, %c0_5], %12 {strides = array<i32>} : memref<8x128xf32, #tpu.memory_space<vmem>>, vector<8x128xf32>,
    %c0_i32_6 = arith.constant 0 : i32
    %14 = arith.cmpi eq, %arg1, %c0_i32_6 : i32
    %15 = arith.extui %14 : i1 to i32
    %cst_7 = arith.constant 0.333333343 : f32
    %c0_i32_8 = arith.constant 0 : i32
    %16 = arith.cmpi ne, %15, %c0_i32_8 : i32
    scf.if %16 {
      %c0_9 = arith.constant 0 : index
      %c0_10 = arith.constant 0 : index
      %17 = vector.load %arg4[%c0_9, %c0_10] : memref<8x128xf32, #tpu.memory_space<vmem>>, vector<8x128xf32>
      %cst_11 = arith.constant dense<0.000000e+00> : vector<8xf32>
      %18 = vector.multi_reduction <add>, %17, %cst_11 [1] : vector<8x128xf32> to vector<8xf32>
      %19 = vector.shape_cast %18 : vector<8xf32> to vector<8x1xf32>
      %cst_12 = arith.constant 3.906250e-03 : f32
      %20 = vector.broadcast %cst_12 : f32 to vector<8x1xf32>
      %21 = arith.mulf %19, %20 : vector<8x1xf32>
      %22 = math.log %21 : vector<8x1xf32>
      %23 = vector.broadcast %cst_7 : f32 to vector<8x1xf32>
      %24 = arith.mulf %22, %23 : vector<8x1xf32>
      %25 = math.exp %24 : vector<8x1xf32>
      %c0_13 = arith.constant 0 : index
      %c0_14 = arith.constant 0 : index
      %26 = vector.load %arg3[%c0_13, %c0_14] : memref<8x1xf32, #tpu.memory_space<vmem>>, vector<8x1xf32>
      tpu.vector_store %arg3[%c0_13, %c0_14], %25 {strides = array<i32>} : memref<8x1xf32, #tpu.memory_space<vmem>>, vector<8x1xf32>,
    } else {
    }
    return
  }
  func.func @transform_0(%arg0: i32, %arg1: i32) -> (i32, i32) {
    %c0_i32 = arith.constant 0 : i32
    return %arg0, %arg1 : i32, i32
  }
  func.func @transform_1(%arg0: i32, %arg1: i32) -> (i32, i32) {
    %c0_i32 = arith.constant 0 : i32
    %c0_i32_0 = arith.constant 0 : i32
    return %arg0, %c0_i32 : i32, i32
  }
}

</mosaic_0001>

<llo_original>
// kernel: tpu_custom_call.1
$region0: #{tpu_custom_call.1}
  #allocation0 [shape = 'u32[]', space=smem, size = 0x4, offset = 0x4, fixed_abs, tag = 'smem constant byte address 0x4 - core index']
  #allocation1 [shape = 'u32[144,128]{1,0:T(1,128)}', space=vmem, size = 0x12000, scoped, tag = 'internal scratch']
  #allocation2 [shape = 'f32[8,128]{1,0:T(8,128)}', space=vmem, size = 0x1000, scoped, tag = 'scratch operand']
  %s0 = inlined_call_operand.hbm [shape: f32[8,256], index: 0, kind: input, shape index: {}]
  %s1 = inlined_call_operand.vmem [shape: f32[8,1], index: 1, kind: output, shape index: {}]
  %s2 = sld [smem:[#allocation0]]
  $region26: #{tpu_custom_call.1} parent=0
    _
  %s4 = ssub.s32 1, %s2
  %s5 = scalar_select 0, %s4, %s2
  $region1: #{tpu_custom_call.1} parent=0
    #allocation3 [shape = 'u8[8192]{0}', space=vmem, size = 0x2000, scoped, tag = 'input window, operand 0, single buffered']
    #allocation4 [shape = 's32[1]{0}', space=sflag, size = 0x4, scoped, tag = 'scoped memory for tpu_custom_call.1']
    %6 = vsyncpa [#allocation4], 0
    // Predicated region
    $region2: #{tpu_custom_call.1} parent=1 // pred_check
      _
    $region3: #{tpu_custom_call.1} parent=1 // pred_check_branch
      %8 = sbr.rel (0) target = $region5
    $region4: #{tpu_custom_call.1} parent=1 // pred_region
      %s10 = ssub.s32 256, 256
      %11 = vsyncadd [#allocation4], %s10
      %s13 = sshll.u32 [#allocation3], 4
      %s14 = int_to_ptr.vmem [resolvable:$true] %s13
      %16 = dma.hbm_to_vmem [thread:$0]  %s0, 256, %s14, [#allocation4]
    $region5: #{tpu_custom_call.1} parent=1 // pred_fallthru
      _
    // Predicated region
    $region6: #{tpu_custom_call.1} parent=1 // pred_check
      _
    $region7: #{tpu_custom_call.1} parent=1 // pred_check_branch
      %18 = sbr.rel (0) target = $region9
    $region8: #{tpu_custom_call.1} parent=1 // pred_region
      %19 = dma.done [#allocation4], 256
    $region9: #{tpu_custom_call.1} parent=1 // pred_fallthru
      _
    %p20 = scmp.eq.s32.totalorder 0, 0
    // Predicated region
    $region10: #{tpu_custom_call.1} parent=1 // pred_check
      %p21 = pneg %p20
    $region11: #{tpu_custom_call.1} parent=1 // pred_check_branch
      %23 = sbr.rel (%p21) target = $region13
    $region12: #{tpu_custom_call.1} parent=1 // pred_region
      %24 = vst [vmem:[#allocation2] sm:$0xff] 0.0
    $region13: #{tpu_custom_call.1} parent=1 // pred_fallthru
      _
    %v25 = vld [vmem:[#allocation3] sm:$0xff]
    %v26 = vld [vmem:[#allocation3 + $0x8] sm:$0xff]
    %v27 = vmax.f32 %v25, 1e-06
    %v28 = vmax.f32 %v26, 1e-06
    %v29 = vmul.f32 %v27, %v27
    %v30 = vmul.f32 %v28, %v28
    %v31 = vmul.f32 %v27, %v29
    %v32 = vmul.f32 %v28, %v30
    %v33 = vadd.f32 %v31, %v32
    %v34 = vld [vmem:[#allocation2] sm:$0xff]
    %v35 = vadd.f32 %v34, %v33
    %36 = vst [vmem:[#allocation2] sm:$0xff] %v35
    // Predicated region
    $region14: #{tpu_custom_call.1} parent=1 // pred_check
      %p37 = pneg %p20
    $region15: #{tpu_custom_call.1} parent=1 // pred_check_branch
      %39 = sbr.rel (%p37) target = $region17
    $region16: #{tpu_custom_call.1} parent=1 // pred_region
      %v40 = vld [vmem:[#allocation2] sm:$0xff]
      %41 = vadd.xlane.f32.xlu0 %v40
      %v42 = vpop.xlane.xlu0 %41
      %v43 = vmul.f32 %v42, 0.00390625
      %v44 = vlog2.pop %v43
      %v45 = vmul.f32 %v44, 0.6931472
      %v46 = vmul.f32 %v45, 0.33333334
      %v47 = vmul.f32 %v46, 1.442695
      %v48 = vpow.pop %v47
      %vm49 = vcmask 7168
      %50 = vst.msk [vmem:[%s1] sm:$0xff] %vm49, %v48
    $region17: #{tpu_custom_call.1} parent=1 // pred_fallthru
      _
    // Predicated region
    $region18: #{tpu_custom_call.1} parent=1 // pred_check
      _
    $region19: #{tpu_custom_call.1} parent=1 // pred_check_branch
      %52 = sbr.rel (0) target = $region21
    $region20: #{tpu_custom_call.1} parent=1 // pred_region
      _
    $region21: #{tpu_custom_call.1} parent=1 // pred_fallthru
      _
    // Predicated region
    $region22: #{tpu_custom_call.1} parent=1 // pred_check
      _
    $region23: #{tpu_custom_call.1} parent=1 // pred_check_branch
      %54 = sbr.rel (0) target = $region25
    $region24: #{tpu_custom_call.1} parent=1 // pred_region
      _
    $region25: #{tpu_custom_call.1} parent=1 // pred_fallthru
      _
    %55 = vsyncpa [#allocation4], 1

</llo_original>
